<compile_context>
chip_gen: v7x
topology: tpu7x:2x2x1
jax: 0.10.0
libtpu: 0.0.40
codegen_flags: <defaults>
</compile_context>

<pallas_src>
import functools
from math import sqrt

import numpy as np
import jax
import jax.numpy as jnp
from jax import lax
from jax.experimental import pallas as pl
from jax.experimental.pallas import tpu as pltpu

_VMEM_LIMIT = 48 * 1024 * 1024   # explicit budget: fits v5e/v6e (128 MiB) and v7x (64 MiB)


# ---------------------------------------------------------------------------
# Kernel 1: BatchNorm1d (training-mode batch stats) + LIF spike generation
# TODO(synk): at Informer scale, tile this as a two-pass reduction over N instead
#             of a single grid=(1,) block.
# ---------------------------------------------------------------------------
def bn_lif_kernel(x_ref, gamma_ref, beta_ref, o_ref):
    x = x_ref[...]                                      # (N, C) f32, N = B*L
    n = x.shape[0]
    mean = jnp.sum(x, axis=0, keepdims=True) * (1.0 / n)
    xc = x - mean
    var = jnp.sum(xc * xc, axis=0, keepdims=True) * (1.0 / n)   # biased var (torch BN train)
    y = xc * lax.rsqrt(var + 1e-5) * gamma_ref[...] + beta_ref[...]
    v = y * 0.5                                         # LIF charge: v = x/tau, v0=0
    o_ref[...] = (v >= 0.3).astype(jnp.bfloat16)        # heaviside spike, exact {0,1}


def bn_lif(x2d, gamma, beta):
    N, C = x2d.shape
    return pl.pallas_call(
        bn_lif_kernel,
        out_shape=jax.ShapeDtypeStruct((N, C), jnp.bfloat16),
        grid=(1,),
        in_specs=[pl.BlockSpec((N, C), lambda i: (0, 0)),
                  pl.BlockSpec((1, C), lambda i: (0, 0)),
                  pl.BlockSpec((1, C), lambda i: (0, 0))],
        out_specs=pl.BlockSpec((N, C), lambda i: (0, 0)),
        compiler_params=pltpu.CompilerParams(vmem_limit_bytes=_VMEM_LIMIT),
    )(x2d, gamma, beta)


# ---------------------------------------------------------------------------
# Kernel 2: sparsity measure M = max(QK_sample) - sum(QK_sample)/L_K
# Full Q@K^T on the MXU; sampled columns selected via the shared count matrix
# cnt[q, k] = #times column k was sampled for query q (handles duplicates exactly).
# ---------------------------------------------------------------------------
def sparsity_kernel(q_ref, k_ref, cnt_ref, m_ref, *, inv_LK):
    H = q_ref.shape[1]
    cnt = cnt_ref[...].astype(jnp.float32)              # (L_Q, L_K), small exact ints
    sampled = cnt > 0.0
    for h in range(H):
        q = q_ref[0, h]                                  # (L_Q, D) bf16 spikes
        k = k_ref[0, h]                                  # (L_K, D) bf16
        s = jnp.einsum('qd,kd->qk', q, k,
                       preferred_element_type=jnp.float32)          # (L_Q, L_K) MXU
        smax = jnp.max(jnp.where(sampled, s, -jnp.inf), axis=-1, keepdims=True)
        ssum = jnp.sum(s * cnt, axis=-1, keepdims=True)
        m_ref[0, h] = smax - ssum * inv_LK               # (L_Q, 1)


def sparsity_measure(Q, K, cnt):
    B, H, L_Q, D = Q.shape
    L_K = K.shape[2]
    kern = functools.partial(sparsity_kernel, inv_LK=1.0 / L_K)
    out = pl.pallas_call(
        kern,
        out_shape=jax.ShapeDtypeStruct((B, H, L_Q, 1), jnp.float32),
        grid=(B,),
        in_specs=[pl.BlockSpec((1, H, L_Q, D), lambda b: (b, 0, 0, 0)),
                  pl.BlockSpec((1, H, L_K, D), lambda b: (b, 0, 0, 0)),
                  pl.BlockSpec((L_Q, L_K), lambda b: (0, 0))],       # resident
        out_specs=pl.BlockSpec((1, H, L_Q, 1), lambda b: (b, 0, 0, 0)),
        compiler_params=pltpu.CompilerParams(
            dimension_semantics=("parallel",), vmem_limit_bytes=_VMEM_LIMIT),
    )(Q, K, cnt)
    return out[..., 0]                                   # (B, H, L_Q)


# ---------------------------------------------------------------------------
# Kernel 3: main hot path, per batch b (all H heads fused):
#   ctx0 = cumsum(V) = tri @ V_lane_dense    (one lane-dense MXU matmul)
#   per head: scores = Qr @ K^T * scale, ProbMask, softmax, attn @ V_h
#             one-hot scatter of the u updated rows (matmul + select, no HBM pass)
#   single full-width (L_Q, H*D) store of the final context.
# ---------------------------------------------------------------------------
def attn_kernel(qr_ref, k_ref, vt_ref, ic_ref, ir_ref, tri_ref, ctx_ref, *, scale):
    H = k_ref.shape[1]
    u = qr_ref.shape[2]
    D = qr_ref.shape[3]
    L_K = k_ref.shape[2]

    vt = vt_ref[0]                                       # (L_K, H*D) bf16, lane-dense V
    tri = tri_ref[...]                                   # (L_Q, L_K) bf16 lower-tri
    ctx0 = jnp.dot(tri, vt, preferred_element_type=jnp.float32)     # (L_Q, H*D) cumsum(V)
    L_Q = ctx0.shape[0]

    pieces = []
    for h in range(H):
        q = qr_ref[0, h]                                 # (u, D)  bf16 spikes (top-u rows)
        k = k_ref[0, h]                                  # (L_K, D) bf16
        v_h = vt[:, h * D:(h + 1) * D]                   # (L_K, D) bf16
        idx_c = ic_ref[0, h]                             # (u, 1)   int32 selected positions
        idx_r = ir_ref[0, h]                             # (1, u)   int32 (same, row layout)

        s = jnp.einsum('qd,kd->qk', q, k,
                       preferred_element_type=jnp.float32) * scale  # (u, L_K)
        cols = lax.broadcasted_iota(jnp.int32, (u, L_K), 1)
        s = jnp.where(cols > idx_c, -jnp.inf, s)         # ProbMask: col > query position

        m = jnp.max(s, axis=-1, keepdims=True)
        e = jnp.exp(s - m)
        attn = e * pl.reciprocal(jnp.sum(e, axis=-1, keepdims=True), approx=True)
        upd = jnp.dot(attn.astype(v_h.dtype), v_h,
                      preferred_element_type=jnp.float32)            # (u, D) f32

        # vectorized scatter: pt[l, r] = 1 iff row l is the r-th selected query
        rows = lax.broadcasted_iota(jnp.int32, (L_Q, u), 0)
        pt = (rows == idx_r).astype(jnp.float32)          # (L_Q, u), exact 0/1, unique rows
        scat = jnp.dot(pt, upd, preferred_element_type=jnp.float32)  # (L_Q, D)
        sel = jnp.sum(pt, axis=-1, keepdims=True)                    # (L_Q, 1) 0/1 row flag
        pieces.append(jnp.where(sel > 0.0, scat, ctx0[:, h * D:(h + 1) * D]))

    ctx_ref[0] = jnp.concatenate(pieces, axis=-1)         # one full-width lane-dense store


def masked_prob_attention(Q_reduce, K, Vt, M_top, tri, scale):
    B, H, u, D = Q_reduce.shape
    _, L_K, HD = Vt.shape
    L_Q = tri.shape[0]
    idx_col = M_top[..., None]                            # (B, H, u, 1) int32
    idx_row = M_top[:, :, None, :]                        # (B, H, 1, u) int32
    kern = functools.partial(attn_kernel, scale=scale)
    return pl.pallas_call(
        kern,
        out_shape=jax.ShapeDtypeStruct((B, L_Q, HD), jnp.float32),
        grid=(B,),
        in_specs=[pl.BlockSpec((1, H, u, D), lambda b: (b, 0, 0, 0)),
                  pl.BlockSpec((1, H, L_K, D), lambda b: (b, 0, 0, 0)),
                  pl.BlockSpec((1, L_K, HD), lambda b: (b, 0, 0)),
                  pl.BlockSpec((1, H, u, 1), lambda b: (b, 0, 0, 0)),
                  pl.BlockSpec((1, H, 1, u), lambda b: (b, 0, 0, 0)),
                  pl.BlockSpec((L_Q, L_K), lambda b: (0, 0))],        # resident tri
        out_specs=pl.BlockSpec((1, L_Q, HD), lambda b: (b, 0, 0)),
        compiler_params=pltpu.CompilerParams(
            dimension_semantics=("parallel",), vmem_limit_bytes=_VMEM_LIMIT),
    )(Q_reduce, K, Vt, idx_col, idx_row, tri)


# ---------------------------------------------------------------------------
# Forward pass (glue: reshapes, random sampling, top-k; heavy work in kernels)
# ---------------------------------------------------------------------------
def prob_attention_forward(queries, keys, values, gamma, beta, sample_key,
                           factor=5, scale=None):
    B, L_Q, H, D = queries.shape
    _, L_K, _, _ = keys.shape
    C = H * D                                             # must equal 64 (BatchNorm1d(64))

    # --- q path: BN (batch stats) + LIF spikes (Pallas kernel 1), bf16 {0,1} output
    q2d = queries.reshape(B * L_Q, C).astype(jnp.float32)
    spikes = bn_lif(q2d, gamma.reshape(1, C), beta.reshape(1, C))    # (B*L_Q, C) bf16

    # reproduce torch `.view(B, H, L, -1)` on contiguous (B, L, H, D): pure reshape
    Q = spikes.reshape(B, H, L_Q, D)                                 # bf16 (exact 0/1)
    K = keys.astype(jnp.bfloat16).reshape(B, H, L_K, D)
    V = values.astype(jnp.bfloat16).reshape(B, H, L_K, D)

    # clamped (the unclamped torch module would simply error for u > L_Q)
    U_part = min(int(factor * np.ceil(np.log(L_K))), L_K)
    u = min(int(factor * np.ceil(np.log(L_Q))), L_Q)

    # random key sampling (torch.randint analogue), shared across (B, H).
    # Turn it into a tiny (L_Q, L_K) count matrix so no (BH, L_Q, U_part, D)
    # gathered tensor is ever written to HBM; duplicates are counted exactly.
    index_sample = jax.random.randint(sample_key, (L_Q, U_part), 0, L_K)
    cnt = jnp.zeros((L_Q, L_K), jnp.float32).at[
        jnp.arange(L_Q)[:, None], index_sample].add(
        jnp.ones((L_Q, U_part), jnp.float32)).astype(jnp.bfloat16)

    M = sparsity_measure(Q, K, cnt)                      # (B, H, L_Q)  (Pallas kernel 2)

    # top-u query selection (same index set as torch topk(sorted=False), modulo ties)
    M_top = lax.top_k(M, u)[1].astype(jnp.int32)         # (B, H, u)
    Q_reduce = jnp.take_along_axis(Q, M_top[..., None], axis=2)      # (B, H, u, D)

    sc = float(scale) if scale is not None else 1.0 / sqrt(D)

    # lane-dense V layout for the kernel: Vt[b, l, h*D + d] = V[b, h, l, d]
    Vt = V.transpose(0, 2, 1, 3).reshape(B, L_K, H * D)

    # lower-triangular cumsum operator (exact 0/1 in bf16), VMEM-resident in kernel 3
    assert L_Q == L_K                                    # mask_flag=True requires L_Q == L_V
    tri = (jnp.arange(L_Q)[:, None] >= jnp.arange(L_K)[None, :]).astype(jnp.bfloat16)

    # --- main attention hot path with fused cumsum + scatter (Pallas kernel 3)
    ctx = masked_prob_attention(Q_reduce, K, Vt, M_top, tri, sc)     # (B, L_Q, H*D)

    # layout plumbing back to the torch output layout (B, H, L_Q, D)
    context = ctx.reshape(B, L_Q, H, D).transpose(0, 2, 1, 3)
    return context, None                                 # output_attention=False


if __name__ == "__main__":
    B, L, H, D = 2, 16, 4, 16                            # H*D = 64 to match BatchNorm1d(64)
    key = jax.random.PRNGKey(0)
    kq, kk, kv, ksamp = jax.random.split(key, 4)
    queries = jax.random.normal(kq, (B, L, H, D), dtype=jnp.float32)
    keys = jax.random.normal(kk, (B, L, H, D), dtype=jnp.float32)
    values = jax.random.normal(kv, (B, L, H, D), dtype=jnp.float32)

    # deterministic BatchNorm1d(64) affine params (PyTorch default init)
    gamma = jnp.ones((H * D,), jnp.float32)
    beta = jnp.zeros((H * D,), jnp.float32)

    ctx, attn = prob_attention_forward(queries, keys, values, gamma, beta, ksamp,
                                       factor=5, scale=None)
    ctx = jax.block_until_ready(ctx)
    assert ctx.shape == (B, H, L, D)
    assert attn is None
    assert bool(jnp.all(jnp.isfinite(ctx)))
    print("KERNEL_OK")
</pallas_src>

<mosaic_0001>
module attributes {stable_mosaic.version = 11 : i64} {
  func.func @bn_lif_kernel(%arg0: i32, %arg1: memref<32x64xf32, #tpu.memory_space<vmem>>, %arg2: memref<1x64xf32, #tpu.memory_space<vmem>>, %arg3: memref<1x64xf32, #tpu.memory_space<vmem>>, %arg4: memref<32x64xbf16, #tpu.memory_space<vmem>>) attributes {dimension_semantics = [#tpu.dimension_semantics<arbitrary>], iteration_bounds = array<i64: 1>, scalar_prefetch = 0 : i64, scratch_operands = 0 : i64, tpu.core_type = #tpu.core_type<tc>, window_params = [{pipeline_mode = #tpu.pipeline_mode<synchronous>, transform_indices = @transform_0, window_bounds = array<i64: 32, 64>}, {pipeline_mode = #tpu.pipeline_mode<synchronous>, transform_indices = @transform_1, window_bounds = array<i64: 1, 64>}, {pipeline_mode = #tpu.pipeline_mode<synchronous>, transform_indices = @transform_2, window_bounds = array<i64: 1, 64>}, {pipeline_mode = #tpu.pipeline_mode<synchronous>, transform_indices = @transform_3, window_bounds = array<i64: 32, 64>}]} {
    %c0 = arith.constant 0 : index
    %c0_0 = arith.constant 0 : index
    %0 = vector.load %arg1[%c0, %c0_0] : memref<32x64xf32, #tpu.memory_space<vmem>>, vector<32x64xf32>
    %cst = arith.constant dense<0.000000e+00> : vector<64xf32>
    %1 = vector.multi_reduction <add>, %0, %cst [0] : vector<32x64xf32> to vector<64xf32>
    %2 = vector.shape_cast %1 : vector<64xf32> to vector<1x64xf32>
    %cst_1 = arith.constant 3.125000e-02 : f32
    %3 = vector.broadcast %cst_1 : f32 to vector<1x64xf32>
    %4 = arith.mulf %2, %3 : vector<1x64xf32>
    %5 = vector.broadcast %4 : vector<1x64xf32> to vector<32x64xf32>
    %6 = arith.subf %0, %5 : vector<32x64xf32>
    %7 = arith.mulf %6, %6 : vector<32x64xf32>
    %cst_2 = arith.constant dense<0.000000e+00> : vector<64xf32>
    %8 = vector.multi_reduction <add>, %7, %cst_2 [0] : vector<32x64xf32> to vector<64xf32>
    %9 = vector.shape_cast %8 : vector<64xf32> to vector<1x64xf32>
    %cst_3 = arith.constant 3.125000e-02 : f32
    %10 = vector.broadcast %cst_3 : f32 to vector<1x64xf32>
    %11 = arith.mulf %9, %10 : vector<1x64xf32>
    %cst_4 = arith.constant 9.99999974E-6 : f32
    %12 = vector.broadcast %cst_4 : f32 to vector<1x64xf32>
    %13 = arith.addf %11, %12 : vector<1x64xf32>
    %14 = math.rsqrt %13 : vector<1x64xf32>
    %15 = vector.broadcast %14 : vector<1x64xf32> to vector<32x64xf32>
    %16 = arith.mulf %6, %15 : vector<32x64xf32>
    %c0_5 = arith.constant 0 : index
    %c0_6 = arith.constant 0 : index
    %17 = vector.load %arg2[%c0_5, %c0_6] : memref<1x64xf32, #tpu.memory_space<vmem>>, vector<1x64xf32>
    %18 = vector.broadcast %17 : vector<1x64xf32> to vector<32x64xf32>
    %19 = arith.mulf %16, %18 : vector<32x64xf32>
    %c0_7 = arith.constant 0 : index
    %c0_8 = arith.constant 0 : index
    %20 = vector.load %arg3[%c0_7, %c0_8] : memref<1x64xf32, #tpu.memory_space<vmem>>, vector<1x64xf32>
    %21 = vector.broadcast %20 : vector<1x64xf32> to vector<32x64xf32>
    %22 = arith.addf %19, %21 : vector<32x64xf32>
    %cst_9 = arith.constant 5.000000e-01 : f32
    %23 = vector.broadcast %cst_9 : f32 to vector<32x64xf32>
    %24 = arith.mulf %22, %23 : vector<32x64xf32>
    %cst_10 = arith.constant 3.000000e-01 : f32
    %25 = vector.broadcast %cst_10 : f32 to vector<32x64xf32>
    %26 = arith.cmpf oge, %24, %25 : vector<32x64xf32>
    %27 = arith.extui %26 : vector<32x64xi1> to vector<32x64xi32>
    %28 = arith.sitofp %27 : vector<32x64xi32> to vector<32x64xf32>
    %29 = arith.truncf %28 : vector<32x64xf32> to vector<32x64xbf16>
    %c0_11 = arith.constant 0 : index
    %c0_12 = arith.constant 0 : index
    %30 = vector.load %arg4[%c0_11, %c0_12] : memref<32x64xbf16, #tpu.memory_space<vmem>>, vector<32x64xbf16>
    tpu.vector_store %arg4[%c0_11, %c0_12], %29 {strides = array<i32>} : memref<32x64xbf16, #tpu.memory_space<vmem>>, vector<32x64xbf16>,
    return
  }
  func.func @transform_0(%arg0: i32) -> (i32, i32) {
    %c0_i32 = arith.constant 0 : i32
    %c0_i32_0 = arith.constant 0 : i32
    %c0_i32_1 = arith.constant 0 : i32
    return %c0_i32, %c0_i32_0 : i32, i32
  }
  func.func @transform_1(%arg0: i32) -> (i32, i32) {
    %c0_i32 = arith.constant 0 : i32
    %c0_i32_0 = arith.constant 0 : i32
    %c0_i32_1 = arith.constant 0 : i32
    return %c0_i32, %c0_i32_0 : i32, i32
  }
  func.func @transform_2(%arg0: i32) -> (i32, i32) {
    %c0_i32 = arith.constant 0 : i32
    %c0_i32_0 = arith.constant 0 : i32
    %c0_i32_1 = arith.constant 0 : i32
    return %c0_i32, %c0_i32_0 : i32, i32
  }
  func.func @transform_3(%arg0: i32) -> (i32, i32) {
    %c0_i32 = arith.constant 0 : i32
    %c0_i32_0 = arith.constant 0 : i32
    %c0_i32_1 = arith.constant 0 : i32
    return %c0_i32, %c0_i32_0 : i32, i32
  }
}

</mosaic_0001>

<llo_original>
// kernel: tpu_custom_call.1
$region0: #{tpu_custom_call.1}
  #allocation0 [shape = 'u32[]', space=smem, size = 0x4, offset = 0x4, fixed_abs, tag = 'smem constant byte address 0x4 - core index']
  #allocation1 [shape = 'u32[144,128]{1,0:T(1,128)}', space=vmem, size = 0x12000, scoped, tag = 'internal scratch']
  %s0 = inlined_call_operand.hbm [shape: f32[32,64], index: 0, kind: input, shape index: {}]
  %s1 = inlined_call_operand.vmem [shape: f32[1,64], index: 1, kind: input, shape index: {}]
  %s2 = inlined_call_operand.vmem [shape: f32[1,64], index: 2, kind: input, shape index: {}]
  %s3 = inlined_call_operand.hbm [shape: bf16[32,64], index: 3, kind: output, shape index: {}]
  %s4 = sld [smem:[#allocation0]]
  $region26: #{tpu_custom_call.1} parent=0
    _
  %s6 = ssub.s32 1, %s4
  %s7 = scalar_select 0, %s6, %s4
  $region1: #{tpu_custom_call.1} parent=0
    #allocation2 [shape = 'u8[16384]{0}', space=vmem, size = 0x4000, scoped, tag = 'input window, operand 0, single buffered']
    #allocation3 [shape = 's32[1]{0}', space=sflag, size = 0x4, scoped, tag = 'scoped memory for tpu_custom_call.1']
    #allocation4 [shape = 's32[1]{0}', space=sflag, size = 0x4, scoped, tag = 'scoped memory for tpu_custom_call.1']
    #allocation5 [shape = 'u8[8192]{0}', space=vmem, size = 0x2000, scoped, tag = 'output window, operand 0, single buffered']
    %8 = vsyncpa [#allocation3], 0
    %9 = vsyncpa [#allocation4], 0
    // Predicated region
    $region2: #{tpu_custom_call.1} parent=1 // pred_check
      _
    $region3: #{tpu_custom_call.1} parent=1 // pred_check_branch
      %11 = sbr.rel (0) target = $region5
    $region4: #{tpu_custom_call.1} parent=1 // pred_region
      %s13 = ssub.s32 512, 512
      %14 = vsyncadd [#allocation3], %s13
      %s15 = sshll.u32 [#allocation2], 4
      %s16 = int_to_ptr.vmem [resolvable:$true] %s15
      %21 = dma.hbm_to_vmem [thread:$0]  %s0, 512, %s16, [#allocation3], 128, 128, 8
    $region5: #{tpu_custom_call.1} parent=1 // pred_fallthru
      _
    // Predicated region
    $region6: #{tpu_custom_call.1} parent=1 // pred_check
      _
    $region7: #{tpu_custom_call.1} parent=1 // pred_check_branch
      %23 = sbr.rel (0) target = $region9
    $region8: #{tpu_custom_call.1} parent=1 // pred_region
      _
    $region9: #{tpu_custom_call.1} parent=1 // pred_fallthru
      _
    // Predicated region
    $region10: #{tpu_custom_call.1} parent=1 // pred_check
      _
    $region11: #{tpu_custom_call.1} parent=1 // pred_check_branch
      %25 = sbr.rel (0) target = $region13
    $region12: #{tpu_custom_call.1} parent=1 // pred_region
      _
    $region13: #{tpu_custom_call.1} parent=1 // pred_fallthru
      _
    // Predicated region
    $region14: #{tpu_custom_call.1} parent=1 // pred_check
      _
    $region15: #{tpu_custom_call.1} parent=1 // pred_check_branch
      %27 = sbr.rel (0) target = $region17
    $region16: #{tpu_custom_call.1} parent=1 // pred_region
      %28 = dma.done [#allocation3], 512
    $region17: #{tpu_custom_call.1} parent=1 // pred_fallthru
      _
    %v29 = vld [vmem:[#allocation2] sm:$0xff]
    %v30 = vld [vmem:[#allocation2 + $0x8] sm:$0xff]
    %v31 = vld [vmem:[#allocation2 + $0x10] sm:$0xff]
    %v32 = vld [vmem:[#allocation2 + $0x18] sm:$0xff]
    %vm33 = vcmask 523264
    %v34 = vsel %vm33, %v29, 0.0
    %v35 = vsel %vm33, %v30, 0.0
    %v36 = vadd.f32 %v34, %v35
    %v37 = vsel %vm33, %v31, 0.0
    %v38 = vadd.f32 %v36, %v37
    %v39 = vsel %vm33, %v32, 0.0
    %v40 = vadd.f32 %v38, %v39
    %v41 = vrot.slane %v40, 4
    %v42 = vadd.f32 %v40, %v41
    %v43 = vrot.slane %v42, 2
    %v44 = vadd.f32 %v42, %v43
    %v45 = vrot.slane %v44, 1
    %v46 = vadd.f32 %v44, %v45
    %v47 = vmul.f32 %v46, 0.03125
    %v48 = vsub.f32 %v29, %v47
    %v49 = vsub.f32 %v30, %v47
    %v50 = vsub.f32 %v31, %v47
    %v51 = vsub.f32 %v32, %v47
    %v52 = vmul.f32 %v48, %v48
    %v53 = vmul.f32 %v49, %v49
    %v54 = vmul.f32 %v50, %v50
    %v55 = vmul.f32 %v51, %v51
    %v56 = vsel %vm33, %v52, 0.0
    %v57 = vsel %vm33, %v53, 0.0
    %v58 = vadd.f32 %v56, %v57
    %v59 = vsel %vm33, %v54, 0.0
    %v60 = vadd.f32 %v58, %v59
    %v61 = vsel %vm33, %v55, 0.0
    %v62 = vadd.f32 %v60, %v61
    %v63 = vrot.slane %v62, 4
    %v64 = vadd.f32 %v62, %v63
    %v65 = vrot.slane %v64, 2
    %v66 = vadd.f32 %v64, %v65
    %v67 = vrot.slane %v66, 1
    %v68 = vadd.f32 %v66, %v67
    %v69 = vmul.f32 %v68, 0.03125
    %v70 = vadd.f32 %v69, 1e-05
    %v71 = vrsqrt.pop %v70
    %v72 = vmul.f32 %v48, %v71
    %v73 = vmul.f32 %v49, %v71
    %v74 = vmul.f32 %v50, %v71
    %v75 = vmul.f32 %v51, %v71
    %v76 = vld [vmem:[%s1] sm:$0x1]
    %v78 = vlaneseq
    %v79 = vshrl.u32 %v78, 7
    %v80 = vsub.s32 0, %v79
    %v81 = vrot.slane %v76, %v80
    %v83 = vmul.f32 %v72, %v81
    %v84 = vmul.f32 %v73, %v81
    %v85 = vmul.f32 %v74, %v81
    %v86 = vmul.f32 %v75, %v81
    %v87 = vld [vmem:[%s2] sm:$0x1]
    %v89 = vlaneseq
    %v90 = vshrl.u32 %v89, 7
    %v91 = vsub.s32 0, %v90
    %v92 = vrot.slane %v87, %v91
    %v94 = vadd.f32 %v83, %v92
    %v95 = vadd.f32 %v84, %v92
    %v96 = vadd.f32 %v85, %v92
    %v97 = vadd.f32 %v86, %v92
    %v98 = vmul.f32 %v94, 0.5
    %v99 = vmul.f32 %v95, 0.5
    %v100 = vmul.f32 %v96, 0.5
    %v101 = vmul.f32 %v97, 0.5
    %vm102 = vcmp.ge.f32.partialorder %v98, 0.3
    %vm103 = vcmp.ge.f32.partialorder %v99, 0.3
    %vm104 = vcmp.ge.f32.partialorder %v100, 0.3
    %vm105 = vcmp.ge.f32.partialorder %v101, 0.3
    %v106 = vsel %vm102, 1, 0
    %v107 = vsel %vm103, 1, 0
    %v108 = vsel %vm104, 1, 0
    %v109 = vsel %vm105, 1, 0
    %v110 = vcvt.s32.f32 %v106
    %v111 = vcvt.s32.f32 %v107
    %v112 = vcvt.s32.f32 %v108
    %v113 = vcvt.s32.f32 %v109
    %v114 = vpack.c.bf16 %v111, %v110
    %v115 = vpack.c.bf16 %v113, %v112
    %v118 = vunpack.c.l.b16 %v114
    %v119 = vunpack.c.h.b16 %v114
    %v120 = vunpack.c.l.b16 %v115
    %v121 = vunpack.c.h.b16 %v115
    %v122 = vpack.c.b16 %v118, %v118
    %v123 = vpack.c.b16 %v119, %v119
    %v124 = vpack.c.b16 %v120, %v120
    %v125 = vpack.c.b16 %v121, %v121
    %vm130 = vcmask 519168
    %131 = vst.msk [vmem:[#allocation5] sm:$0xf] %vm130, %v122
    %132 = vst.msk [vmem:[#allocation5 + $0x4] sm:$0xf] %vm130, %v123
    %133 = vst.msk [vmem:[#allocation5 + $0x8] sm:$0xf] %vm130, %v124
    %134 = vst.msk [vmem:[#allocation5 + $0xc] sm:$0xf] %vm130, %v125
    // Predicated region
    $region18: #{tpu_custom_call.1} parent=1 // pred_check
      _
    $region19: #{tpu_custom_call.1} parent=1 // pred_check_branch
      %136 = sbr.rel (0) target = $region21
    $region20: #{tpu_custom_call.1} parent=1 // pred_region
      %s138 = ssub.s32 256, 256
      %139 = vsyncadd [#allocation4], %s138
      %s140 = sshll.u32 [#allocation5], 4
      %s141 = int_to_ptr.vmem [resolvable:$true] %s140
      %146 = dma.vmem_to_hbm [thread:$0]  %s141, 256, %s3, [#allocation4], 64, 64, 4
    $region21: #{tpu_custom_call.1} parent=1 // pred_fallthru
      _
    // Predicated region
    $region22: #{tpu_custom_call.1} parent=1 // pred_check
      _
    $region23: #{tpu_custom_call.1} parent=1 // pred_check_branch
      %148 = sbr.rel (0) target = $region25
    $region24: #{tpu_custom_call.1} parent=1 // pred_region
      %149 = dma.done [#allocation4], 256
    $region25: #{tpu_custom_call.1} parent=1 // pred_fallthru
      _
    %150 = vsyncpa [#allocation3], 1
    %151 = vsyncpa [#allocation4], 1

</llo_original>
